<compile_context>
chip_gen: v7x
topology: tpu7x:2x2x1
jax: 0.10.0
libtpu: 0.0.40
codegen_flags: <defaults>
</compile_context>

<pallas_src>
import functools

import jax
import jax.numpy as jnp
import numpy as np
from jax.experimental import pallas as pl
from jax.experimental.pallas import tpu as pltpu


def _round_up(x, m):
    return ((x + m - 1) // m) * m


def _proj_kernel(x_ref, w_ref, b_ref, o_ref):
    # x_ref: (TM, K) bf16   w_ref: (K, Np) bf16   b_ref: (1, Np) f32
    # o_ref: (TM, Np) f32
    acc = jnp.dot(x_ref[...], w_ref[...], preferred_element_type=jnp.float32)
    o_ref[...] = (acc + b_ref[...]).astype(o_ref.dtype)


def patch_proj(x, weight_t, bias, kernel_size, *, tm=512):
    """Equivalent of PatchProj.forward.

    x:        (b, c, h, w) float32, NCHW
    weight_t: (input_size, num_hidden)  -- pre-transposed Linear weight (W^T)
    bias:     (num_hidden,)
    returns   (b, (h//k)*(w//k), num_hidden) float32
    """
    b, c, h, w = x.shape
    k = kernel_size
    assert h == w and h % k == 0
    step = h // k
    K = c * k * k
    assert weight_t.shape[0] == K
    N = weight_t.shape[1]

    # nn.Unfold((k,k), stride=k) + .transpose(-1,-2): pure layout plumbing.
    # result[b, ph*step+pw, :] = x[b, :, ph*k:(ph+1)*k, pw*k:(pw+1)*k] flattened
    # in (c, kh, kw) order. allow_input_fusion below lets XLA fold this into
    # the kernel's input DMA rather than round-tripping through HBM.
    patches = x.reshape(b, c, step, k, step, k)
    patches = jnp.transpose(patches, (0, 2, 4, 1, 3, 5))        # (b, step, step, c, k, k)
    M = b * step * step
    x2d = patches.reshape(M, K).astype(jnp.bfloat16)            # bf16 MXU input

    # Tile / padding choices.
    TM = min(tm, _round_up(M, 8))           # rows per grid step (multiple of 8)
    M_pad = _round_up(M, TM)                # no ragged last tile
    N_pad = _round_up(N, 128)               # lane-dense output stores

    if M_pad != M:
        x2d = jnp.pad(x2d, ((0, M_pad - M), (0, 0)))
    w2d = weight_t.astype(jnp.bfloat16)
    b2d = bias.astype(jnp.float32).reshape(1, N)
    if N_pad != N:
        w2d = jnp.pad(w2d, ((0, 0), (0, N_pad - N)))
        b2d = jnp.pad(b2d, ((0, 0), (0, N_pad - N)))

    grid = (M_pad // TM,)

    cost = pl.CostEstimate(
        flops=2 * M_pad * K * N_pad,
        transcendentals=0,
        bytes_accessed=(M_pad * K * 2          # x (bf16)
                        + K * N_pad * 2        # weight (bf16)
                        + N_pad * 4            # bias (f32)
                        + M_pad * N_pad * 4),  # output (f32)
    )

    out2d = pl.pallas_call(
        _proj_kernel,
        out_shape=jax.ShapeDtypeStruct((M_pad, N_pad), jnp.float32),
        grid=grid,
        in_specs=[
            pl.BlockSpec((TM, K), lambda i: (i, 0)),      # streamed over M
            pl.BlockSpec((K, N_pad), lambda i: (0, 0)),   # weight resident
            pl.BlockSpec((1, N_pad), lambda i: (0, 0)),   # bias resident
        ],
        out_specs=pl.BlockSpec((TM, N_pad), lambda i: (i, 0)),
        compiler_params=pltpu.CompilerParams(
            dimension_semantics=("parallel",),            # shard M across v7x's 2 TCs
            allow_input_fusion=[True, False, False],      # fuse unfold transpose into x DMA
        ),
        cost_estimate=cost,
    )(x2d, w2d, b2d)

    out = out2d[:M, :N]
    return out.reshape(b, step * step, N)


def init_params(key, input_size, num_hidden):
    # kaiming_uniform_ (a=0, fan_in mode): bound = sqrt(6 / fan_in).
    # Weight is stored pre-transposed as (K, N) so the forward path never
    # executes a transpose.
    bound = float(np.sqrt(6.0 / input_size))
    weight_t = jax.random.uniform(
        key, (input_size, num_hidden), dtype=jnp.float32,
        minval=-bound, maxval=bound)
    bias = jnp.zeros((num_hidden,), dtype=jnp.float32)
    return weight_t, bias


if __name__ == "__main__":
    # Small shapes consistent with the module's forward.
    batch, channels, spatial = 2, 4, 16
    kernel_size = 4
    input_size = channels * kernel_size * kernel_size      # 64
    num_hidden = 128

    key = jax.random.PRNGKey(0)
    kx, kw = jax.random.split(key)
    x = jax.random.normal(kx, (batch, channels, spatial, spatial), dtype=jnp.float32)
    weight_t, bias = init_params(kw, input_size, num_hidden)

    fwd = jax.jit(functools.partial(patch_proj, kernel_size=kernel_size))
    out = fwd(x, weight_t, bias)
    out = jax.block_until_ready(out)

    # Pure-JAX f32 reference (same unfold + linear). Kernel uses bf16 inputs
    # with f32 accumulation, so tolerances are loosened accordingly.
    step = spatial // kernel_size
    ref_patches = x.reshape(batch, channels, step, kernel_size, step, kernel_size)
    ref_patches = jnp.transpose(ref_patches, (0, 2, 4, 1, 3, 5)).reshape(
        batch, step * step, input_size)
    ref = ref_patches @ weight_t + bias

    assert out.shape == (batch, step * step, num_hidden)
    np.testing.assert_allclose(np.asarray(out), np.asarray(ref), rtol=3e-2, atol=3e-2)

    print("KERNEL_OK")
</pallas_src>

<mosaic_0001>
module attributes {stable_mosaic.version = 11 : i64} {
  func.func @_proj_kernel(%arg0: i32, %arg1: memref<32x64xbf16, #tpu.memory_space<vmem>>, %arg2: memref<64x128xbf16, #tpu.memory_space<vmem>>, %arg3: memref<1x128xf32, #tpu.memory_space<vmem>>, %arg4: memref<32x128xf32, #tpu.memory_space<vmem>>) attributes {dimension_semantics = [#tpu.dimension_semantics<parallel>], iteration_bounds = array<i64: 1>, scalar_prefetch = 0 : i64, scratch_operands = 0 : i64, tpu.core_type = #tpu.core_type<tc>, window_params = [{transform_indices = @transform_0, window_bounds = array<i64: 32, 64>}, {pipeline_mode = #tpu.pipeline_mode<synchronous>, transform_indices = @transform_1, window_bounds = array<i64: 64, 128>}, {pipeline_mode = #tpu.pipeline_mode<synchronous>, transform_indices = @transform_2, window_bounds = array<i64: 1, 128>}, {transform_indices = @transform_3, window_bounds = array<i64: 32, 128>}]} {
    %c0 = arith.constant 0 : index
    %c0_0 = arith.constant 0 : index
    %0 = vector.load %arg1[%c0, %c0_0] : memref<32x64xbf16, #tpu.memory_space<vmem>>, vector<32x64xbf16>
    %c0_1 = arith.constant 0 : index
    %c0_2 = arith.constant 0 : index
    %1 = vector.load %arg2[%c0_1, %c0_2] : memref<64x128xbf16, #tpu.memory_space<vmem>>, vector<64x128xbf16>
    %cst = arith.constant dense<0.000000e+00> : vector<32x128xf32>
    %2 = tpu.matmul %0, %1, %cst {dimension_numbers = #tpu.dot_dimension_numbers<[1], [0], [0], [1], [0, 0, 1, 1], [], []>} : vector<32x64xbf16>, vector<64x128xbf16>, vector<32x128xf32> -> vector<32x128xf32>
    %c0_3 = arith.constant 0 : index
    %c0_4 = arith.constant 0 : index
    %3 = vector.load %arg3[%c0_3, %c0_4] : memref<1x128xf32, #tpu.memory_space<vmem>>, vector<1x128xf32>
    %4 = vector.broadcast %3 : vector<1x128xf32> to vector<32x128xf32>
    %5 = arith.addf %2, %4 : vector<32x128xf32>
    %c0_5 = arith.constant 0 : index
    %c0_6 = arith.constant 0 : index
    %6 = vector.load %arg4[%c0_5, %c0_6] : memref<32x128xf32, #tpu.memory_space<vmem>>, vector<32x128xf32>
    tpu.vector_store %arg4[%c0_5, %c0_6], %5 {strides = array<i32>} : memref<32x128xf32, #tpu.memory_space<vmem>>, vector<32x128xf32>,
    return
  }
  func.func @transform_0(%arg0: i32) -> (i32, i32) {
    %c0_i32 = arith.constant 0 : i32
    %c0_i32_0 = arith.constant 0 : i32
    return %arg0, %c0_i32 : i32, i32
  }
  func.func @transform_1(%arg0: i32) -> (i32, i32) {
    %c0_i32 = arith.constant 0 : i32
    %c0_i32_0 = arith.constant 0 : i32
    %c0_i32_1 = arith.constant 0 : i32
    return %c0_i32, %c0_i32_0 : i32, i32
  }
  func.func @transform_2(%arg0: i32) -> (i32, i32) {
    %c0_i32 = arith.constant 0 : i32
    %c0_i32_0 = arith.constant 0 : i32
    %c0_i32_1 = arith.constant 0 : i32
    return %c0_i32, %c0_i32_0 : i32, i32
  }
  func.func @transform_3(%arg0: i32) -> (i32, i32) {
    %c0_i32 = arith.constant 0 : i32
    %c0_i32_0 = arith.constant 0 : i32
    return %arg0, %c0_i32 : i32, i32
  }
}

</mosaic_0001>

<llo_original>
// kernel: patch_proj.1
$region0: #{patch_proj.1}
  #allocation0 [shape = 'u32[]', space=smem, size = 0x4, offset = 0x4, fixed_abs, tag = 'smem constant byte address 0x4 - core index']
  #allocation1 [shape = 'u32[144,128]{1,0:T(1,128)}', space=vmem, size = 0x12000, scoped, tag = 'internal scratch']
  %s0 = inlined_call_operand.vmem [shape: bf16[32,64], index: 0, kind: input, shape index: {}]
  %s1 = inlined_call_operand.vmem [shape: bf16[64,128], index: 1, kind: input, shape index: {}]
  %s2 = inlined_call_operand.vmem [shape: f32[1,128], index: 2, kind: input, shape index: {}]
  %s3 = inlined_call_operand.hbm [shape: f32[32,128], index: 3, kind: output, shape index: {}]
  %s4 = sld [smem:[#allocation0]]
  $region22: #{patch_proj.1} parent=0
    _
  %s6 = ssub.s32 1, %s4
  %s7 = scalar_select 0, %s6, %s4
  $region1: #{patch_proj.1} parent=0
    #allocation2 [shape = 'u8[16384]{0}', space=vmem, size = 0x4000, scoped, tag = 'output window, operand 0, single buffered']
    #allocation3 [shape = 's32[1]{0}', space=sflag, size = 0x4, scoped, tag = 'scoped memory for patch_proj.1']
    %8 = vsyncpa [#allocation3], 0
    // Predicated region
    $region2: #{patch_proj.1} parent=1 // pred_check
      _
    $region3: #{patch_proj.1} parent=1 // pred_check_branch
      %10 = sbr.rel (0) target = $region5
    $region4: #{patch_proj.1} parent=1 // pred_region
      _
    $region5: #{patch_proj.1} parent=1 // pred_fallthru
      _
    // Predicated region
    $region6: #{patch_proj.1} parent=1 // pred_check
      _
    $region7: #{patch_proj.1} parent=1 // pred_check_branch
      %12 = sbr.rel (0) target = $region9
    $region8: #{patch_proj.1} parent=1 // pred_region
      _
    $region9: #{patch_proj.1} parent=1 // pred_fallthru
      _
    // Predicated region
    $region10: #{patch_proj.1} parent=1 // pred_check
      _
    $region11: #{patch_proj.1} parent=1 // pred_check_branch
      %14 = sbr.rel (0) target = $region13
    $region12: #{patch_proj.1} parent=1 // pred_region
      _
    $region13: #{patch_proj.1} parent=1 // pred_fallthru
      _
    %v16 = vld [vmem:[%s0] sm:$0xf]
    %v17 = vld [vmem:[%s0 + $0x4] sm:$0xf]
    %v18 = vld [vmem:[%s0 + $0x8] sm:$0xf]
    %v19 = vld [vmem:[%s0 + $0xc] sm:$0xf]
    %v20 = vld [vmem:[%s1] sm:$0xf]
    %v21 = vld [vmem:[%s1 + $0x4] sm:$0xf]
    %v22 = vld [vmem:[%s1 + $0x8] sm:$0xf]
    %v23 = vld [vmem:[%s1 + $0xc] sm:$0xf]
    %v24 = vld [vmem:[%s1 + $0x10] sm:$0xf]
    %v25 = vld [vmem:[%s1 + $0x14] sm:$0xf]
    %v26 = vld [vmem:[%s1 + $0x18] sm:$0xf]
    %v27 = vld [vmem:[%s1 + $0x1c] sm:$0xf]
    %v28 = vld [vmem:[%s2] sm:$0x1]
    %v30 = vlaneseq
    %v31 = vshrl.u32 %v30, 7
    %v32 = vsub.s32 0, %v31
    %v33 = vrot.slane %v28, %v32
    %v39 = vunpack.c.l.b16 %v16
    %v40 = vunpack.c.l.b16 %v17
    %v41 = vunpack.c.l.b16 %v18
    %v42 = vunpack.c.l.b16 %v19
    %v43 = vpack.c.b16 %v40, %v39
    %v44 = vpack.c.b16 %v42, %v41
    %v53 = vunpack.c.l.b16 %v20
    %v54 = vunpack.c.l.b16 %v21
    %v55 = vunpack.c.l.b16 %v22
    %v56 = vunpack.c.l.b16 %v23
    %v57 = vunpack.c.l.b16 %v24
    %v58 = vunpack.c.l.b16 %v25
    %v59 = vunpack.c.l.b16 %v26
    %v60 = vunpack.c.l.b16 %v27
    %v61 = vpack.c.b16 %v54, %v53
    %v62 = vpack.c.b16 %v56, %v55
    %v63 = vpack.c.b16 %v58, %v57
    %v64 = vpack.c.b16 %v60, %v59
    %vm69 = vcmask 523264
    %v71 = vsel %vm69, %v43, 0
    %v74 = vsel %vm69, %v44, 0
    %76 = vmatprep.subr.bf16.mxu0 0
    %77 = vmatpush1.bf16.msra.mxu0 %v61
    %78 = vmatprep.subr.bf16.mxu0 0
    %79 = vmatpush1.bf16.msra.mxu0 %v62
    %80 = vmatprep.subr.bf16.mxu0 0
    %81 = vmatpush1.bf16.msra.mxu0 %v63
    %82 = vmatprep.subr.bf16.mxu0 0
    %83 = vmatpush1.bf16.msra.mxu0 %v64
    %84 = vmatprep.subr.bf16.mxu0 0
    %85 = vmatpush1.bf16.msra.mxu0 0
    %86 = vmatprep.subr.bf16.mxu0 0
    %87 = vmatpush1.bf16.msra.mxu0 0
    %88 = vmatprep.subr.bf16.mxu0 0
    %89 = vmatpush1.bf16.msra.mxu0 0
    %90 = vmatprep.subr.bf16.mxu0 0
    %91 = vmatpush1.bf16.msra.mxu0 0
    %92 = vmatprep.subr.bf16.mxu0 0
    %93 = vmatpush1.bf16.msra.mxu0 0
    %94 = vmatprep.subr.bf16.mxu0 0
    %95 = vmatpush1.bf16.msra.mxu0 0
    %96 = vmatprep.subr.bf16.mxu0 0
    %97 = vmatpush1.bf16.msra.mxu0 0
    %98 = vmatprep.subr.bf16.mxu0 0
    %99 = vmatpush1.bf16.msra.mxu0 0
    %100 = vmatprep.subr.bf16.mxu0 0
    %101 = vmatpush1.bf16.msra.mxu0 0
    %102 = vmatprep.subr.bf16.mxu0 0
    %103 = vmatpush1.bf16.msra.mxu0 0
    %104 = vmatprep.subr.bf16.mxu0 0
    %105 = vmatpush1.bf16.msra.mxu0 0
    %106 = vmatprep.subr.bf16.mxu0 0
    %107 = vmatpush1.bf16.msra.mxu0 0
    %108 = vmatprep.mubr.bf16.mxu0 0
    %109 = vmatmul.mubr.bf16.gmra.mrb[0].mxu0 %v71
    %v110 = vpop.f32.mrb[0].mxu0
    %v111 = vadd.f32 %v33, %v110
    %v112 = vpop.f32.mrb[0].mxu0
    %v113 = vpop.f32.mrb[0].mxu0
    %v114 = vadd.f32 %v33, %v113
    %v115 = vpop.f32.mrb[0].mxu0
    %116 = vmatprep.mubr.bf16.mxu0 0
    %117 = vmatmul.mubr.bf16.gmra.mrb[0].mxu0 %v74
    %v118 = vpop.f32.mrb[0].mxu0
    %v119 = vadd.f32 %v33, %v118
    %v120 = vpop.f32.mrb[0].mxu0
    %v121 = vpop.f32.mrb[0].mxu0
    %v122 = vadd.f32 %v33, %v121
    %v123 = vpop.f32.mrb[0].mxu0
    %124 = vdwg.mxu0
    %125 = vst [vmem:[#allocation2] sm:$0xff] %v111
    %126 = vst [vmem:[#allocation2 + $0x8] sm:$0xff] %v114
    %127 = vst [vmem:[#allocation2 + $0x10] sm:$0xff] %v119
    %128 = vst [vmem:[#allocation2 + $0x18] sm:$0xff] %v122
    // Predicated region
    $region14: #{patch_proj.1} parent=1 // pred_check
      _
    $region15: #{patch_proj.1} parent=1 // pred_check_branch
      %130 = sbr.rel (0) target = $region17
    $region16: #{patch_proj.1} parent=1 // pred_region
      %s132 = ssub.s32 512, 512
      %133 = vsyncadd [#allocation3], %s132
      %s134 = sshll.u32 [#allocation2], 4
      %s135 = int_to_ptr.vmem [resolvable:$true] %s134
      %140 = dma.vmem_to_hbm [thread:$0]  %s135, 512, %s3, [#allocation3], 128, 128, 8
    $region17: #{patch_proj.1} parent=1 // pred_fallthru
      _
    // Predicated region
    $region18: #{patch_proj.1} parent=1 // pred_check
      _
    $region19: #{patch_proj.1} parent=1 // pred_check_branch
      %142 = sbr.rel (0) target = $region21
    $region20: #{patch_proj.1} parent=1 // pred_region
      %143 = dma.done [#allocation3], 512
    $region21: #{patch_proj.1} parent=1 // pred_fallthru
      _
    %144 = vsyncpa [#allocation3], 1

</llo_original>
